<compile_context>
chip_gen: v6e
topology: v6e:2x2x1
jax: 0.10.0
libtpu: 0.0.40
codegen_flags: <defaults>
</compile_context>

<pallas_src>
import functools
import math

import jax
import jax.numpy as jnp
from jax import lax
from jax.experimental import pallas as pl
from jax.experimental.pallas import tpu as pltpu

_LN_10000 = math.log(10000.0)
_HALF_PI = 0.5 * math.pi


def _pe_add_kernel(x_ref, o_ref, *, d, rows, cols, hoist):
    """Add the sinusoidal PE to one (tB, rows, cols) block of x.

    The PE tile is built once per block at shape (1, rows, cols) and broadcast
    over the batch sub-dimension, so transcendental cost is amortized over
    every batch row carried in the block.
    """
    r0 = pl.program_id(1) * rows  # first (flat) row of this block

    if hoist:
        # cols == d: columns are exactly the feature axis -> the expensive
        # exp() only needs a (1, 1, d) row; positions broadcast against it.
        j = lax.broadcasted_iota(jnp.int32, (1, 1, cols), 2)
        inv_div = jnp.exp(j.astype(jnp.float32) * (-_LN_10000 / d))       # (1,1,d)
        phase = (j & 1).astype(jnp.float32) * _HALF_PI                    # (1,1,d)
        pos = (r0 + lax.broadcasted_iota(jnp.int32, (1, rows, cols), 1)
               ).astype(jnp.float32)                                      # (1,R,d)
        angle = pos * inv_div + phase
    else:
        # Flattened (seq*dim) lane-dense layout: recover position / feature
        # from the global flat index.  Still computed once per block.
        lr = lax.broadcasted_iota(jnp.int32, (1, rows, cols), 1)
        lc = lax.broadcasted_iota(jnp.int32, (1, rows, cols), 2)
        flat = (r0 + lr) * cols + lc
        if (d & (d - 1)) == 0:                      # power-of-two feature dim
            shift = d.bit_length() - 1
            pos = (flat >> shift).astype(jnp.float32)
            j = flat & (d - 1)
        else:
            pos = (flat // d).astype(jnp.float32)
            j = flat % d
        inv_div = jnp.exp(j.astype(jnp.float32) * (-_LN_10000 / d))
        angle = pos * inv_div + (j & 1).astype(jnp.float32) * _HALF_PI

    # cos(x) == sin(x + pi/2): one transcendental instead of sin + cos + select.
    pe = jnp.sin(angle)                                                   # (1,R,C)
    o_ref[...] = (x_ref[...].astype(jnp.float32) + pe).astype(o_ref.dtype)


def _pick_batch_block(b):
    for cand in (8, 4, 2, 1):
        if b % cand == 0:
            return cand
    return 1


def _pick_row_block(n_rows, max_rows):
    if n_rows <= max_rows:
        return n_rows
    best = 1  # divisor fallback (rare shapes); still correct
    r = 8
    while r <= max_rows:
        if n_rows % r == 0:
            best = r
        r += 8
    return best


def positional_encoding(x, max_seq_len, *, vmem_budget_bytes=20 << 20):
    """x: (B, S, D) float array; returns x + pe[:, :S] (batch-first)."""
    B, S, D = x.shape
    assert S <= max_seq_len, "sequence longer than max_seq_len"
    assert S < (1 << 24), "f32 position iota is exact only below 2**24"

    N = S * D
    # Lane (last) dim: keep D if it is already a multiple of 128, otherwise
    # flatten seq*dim and re-split on a 128-multiple column count so stores
    # are unmasked (lane-dense).  Correct fallback: keep D.
    if D % 128 == 0:
        cols = D
    else:
        cols = D
        for cand in (2048, 1024, 512, 256, 128):
            if N % cand == 0:
                cols = cand
                break
    n_rows = N // cols
    hoist = cols == D

    # Batch rows per block: the PE tile is shared (broadcast) across these.
    tB = _pick_batch_block(B)

    # Row tile sized so double-buffered in+out f32 blocks stay inside the
    # VMEM budget (safe for v7x's 64 MiB VMEM as well as v5e/v6e's 128 MiB).
    bytes_per_row = 4 * tB * cols * 4            # 2 in-bufs + 2 out-bufs, f32
    max_rows = max(1, vmem_budget_bytes // bytes_per_row)
    tR = _pick_row_block(n_rows, max_rows)

    footprint = 4 * tB * tR * cols * 4
    vmem_limit = int(min(max(2 * footprint, 16 << 20), 48 << 20))

    xf = x.reshape(B, n_rows, cols)
    kernel = functools.partial(_pe_add_kernel, d=D, rows=tR, cols=cols, hoist=hoist)

    out = pl.pallas_call(
        kernel,
        out_shape=jax.ShapeDtypeStruct((B, n_rows, cols), x.dtype),
        grid_spec=pl.GridSpec(
            grid=(B // tB, n_rows // tR),
            in_specs=[pl.BlockSpec((tB, tR, cols), lambda b, r: (b, r, 0))],
            out_specs=pl.BlockSpec((tB, tR, cols), lambda b, r: (b, r, 0)),
        ),
        compiler_params=pltpu.CompilerParams(
            dimension_semantics=("parallel", "parallel"),
            vmem_limit_bytes=vmem_limit,
        ),
    )(xf)
    return out.reshape(B, S, D)


def _reference_pe(max_seq_len, embedding_dim):
    """Pure-JAX reproduction of the PyTorch __init__ buffer (for checking)."""
    position = jnp.arange(max_seq_len, dtype=jnp.float32)[:, None]
    div_even = jnp.power(10000.0,
                         jnp.arange(0, embedding_dim, 2, dtype=jnp.float32)
                         / embedding_dim)
    div_odd = jnp.power(10000.0,
                        jnp.arange(1, embedding_dim, 2, dtype=jnp.float32)
                        / embedding_dim)
    pe = jnp.zeros((max_seq_len, embedding_dim), jnp.float32)
    pe = pe.at[:, 0::2].set(jnp.sin(position / div_even))
    pe = pe.at[:, 1::2].set(jnp.cos(position / div_odd))
    return pe[None]  # (1, max_seq_len, D)


if __name__ == "__main__":
    B, S, D = 2, 8, 32
    MAX_SEQ_LEN = 16

    key = jax.random.PRNGKey(0)
    x = jax.random.normal(key, (B, S, D), dtype=jnp.float32)

    out = jax.block_until_ready(positional_encoding(x, MAX_SEQ_LEN))

    # correctness check against plain-JAX reference of the torch module
    ref = x + _reference_pe(MAX_SEQ_LEN, D)[:, :S]
    assert out.shape == (B, S, D)
    assert jnp.allclose(out, ref, atol=1e-5, rtol=1e-5), "mismatch vs reference"

    print("KERNEL_OK")
</pallas_src>

<mosaic_0001>
module attributes {stable_mosaic.version = 11 : i64} {
  func.func @_pe_add_kernel(%arg0: i32, %arg1: i32, %arg2: memref<2x1x256xf32, #tpu.memory_space<vmem>>, %arg3: memref<2x1x256xf32, #tpu.memory_space<vmem>>) attributes {dimension_semantics = [#tpu.dimension_semantics<parallel>, #tpu.dimension_semantics<parallel>], iteration_bounds = array<i64: 1, 1>, scalar_prefetch = 0 : i64, scratch_operands = 0 : i64, tpu.core_type = #tpu.core_type<tc>, window_params = [{transform_indices = @transform_0, window_bounds = array<i64: 2, 1, 256>}, {transform_indices = @transform_1, window_bounds = array<i64: 2, 1, 256>}]} {
    %c1_i32 = arith.constant 1 : i32
    %0 = arith.muli %arg1, %c1_i32 : i32
    %1 = tpu.iota {dimensions = array<i32: 1>} : vector<1x1x256xi32>
    %2 = tpu.iota {dimensions = array<i32: 2>} : vector<1x1x256xi32>
    %3 = vector.broadcast %0 : i32 to vector<1x1x256xi32>
    %4 = arith.addi %3, %1 : vector<1x1x256xi32>
    %c256_i32 = arith.constant 256 : i32
    %5 = vector.broadcast %c256_i32 : i32 to vector<1x1x256xi32>
    %6 = arith.muli %4, %5 : vector<1x1x256xi32>
    %7 = arith.addi %6, %2 : vector<1x1x256xi32>
    %c5_i32 = arith.constant 5 : i32
    %8 = vector.broadcast %c5_i32 : i32 to vector<1x1x256xi32>
    %9 = arith.shrsi %7, %8 : vector<1x1x256xi32>
    %10 = arith.sitofp %9 : vector<1x1x256xi32> to vector<1x1x256xf32>
    %c31_i32 = arith.constant 31 : i32
    %11 = vector.broadcast %c31_i32 : i32 to vector<1x1x256xi32>
    %12 = arith.andi %7, %11 : vector<1x1x256xi32>
    %13 = arith.sitofp %12 : vector<1x1x256xi32> to vector<1x1x256xf32>
    %cst = arith.constant -0.287823141 : f32
    %14 = vector.broadcast %cst : f32 to vector<1x1x256xf32>
    %15 = arith.mulf %13, %14 : vector<1x1x256xf32>
    %16 = math.exp %15 : vector<1x1x256xf32>
    %17 = arith.mulf %10, %16 : vector<1x1x256xf32>
    %c1_i32_0 = arith.constant 1 : i32
    %18 = vector.broadcast %c1_i32_0 : i32 to vector<1x1x256xi32>
    %19 = arith.andi %12, %18 : vector<1x1x256xi32>
    %20 = arith.sitofp %19 : vector<1x1x256xi32> to vector<1x1x256xf32>
    %cst_1 = arith.constant 1.57079637 : f32
    %21 = vector.broadcast %cst_1 : f32 to vector<1x1x256xf32>
    %22 = arith.mulf %20, %21 : vector<1x1x256xf32>
    %23 = arith.addf %17, %22 : vector<1x1x256xf32>
    %24 = math.sin %23 : vector<1x1x256xf32>
    %c0 = arith.constant 0 : index
    %c0_2 = arith.constant 0 : index
    %c0_3 = arith.constant 0 : index
    %25 = vector.load %arg2[%c0, %c0_2, %c0_3] : memref<2x1x256xf32, #tpu.memory_space<vmem>>, vector<2x1x256xf32>
    %26 = vector.broadcast %24 : vector<1x1x256xf32> to vector<2x1x256xf32>
    %27 = arith.addf %25, %26 : vector<2x1x256xf32>
    %c0_4 = arith.constant 0 : index
    %c0_5 = arith.constant 0 : index
    %c0_6 = arith.constant 0 : index
    %28 = vector.load %arg3[%c0_4, %c0_5, %c0_6] : memref<2x1x256xf32, #tpu.memory_space<vmem>>, vector<2x1x256xf32>
    tpu.vector_store %arg3[%c0_4, %c0_5, %c0_6], %27 {strides = array<i32>} : memref<2x1x256xf32, #tpu.memory_space<vmem>>, vector<2x1x256xf32>,
    return
  }
  func.func @transform_0(%arg0: i32, %arg1: i32) -> (i32, i32, i32) {
    %c0_i32 = arith.constant 0 : i32
    %c0_i32_0 = arith.constant 0 : i32
    return %arg0, %arg1, %c0_i32 : i32, i32, i32
  }
  func.func @transform_1(%arg0: i32, %arg1: i32) -> (i32, i32, i32) {
    %c0_i32 = arith.constant 0 : i32
    %c0_i32_0 = arith.constant 0 : i32
    return %arg0, %arg1, %c0_i32 : i32, i32, i32
  }
}

</mosaic_0001>

<llo_original>
// kernel: tpu_custom_call.1
$region0: #{tpu_custom_call.1}
  #allocation0 [shape = 'u32[]', space=smem, size = 0x4, offset = 0x4, fixed_abs, tag = 'smem constant byte address 0x4 - core index']
  #allocation1 [shape = 'u32[144,128]{1,0:T(1,128)}', space=vmem, size = 0x12000, scoped, tag = 'internal scratch']
  %s0 = inlined_call_operand.hbm [shape: f32[2,1,256], index: 0, kind: input, shape index: {}]
  %s1 = inlined_call_operand.hbm [shape: f32[2,1,256], index: 1, kind: output, shape index: {}]
  %s2 = sld [smem:[#allocation0]]
  $region18: #{tpu_custom_call.1} parent=0
    _
  %s4 = ssub.s32 1, %s2
  %s5 = scalar_select 0, %s4, %s2
  $region1: #{tpu_custom_call.1} parent=0
    #allocation2 [shape = 'u8[2048]{0}', space=vmem, size = 0x800, scoped, tag = 'input window, operand 0, single buffered']
    #allocation3 [shape = 's32[1]{0}', space=sflag, size = 0x4, scoped, tag = 'scoped memory for tpu_custom_call.1']
    #allocation4 [shape = 's32[1]{0}', space=sflag, size = 0x4, scoped, tag = 'scoped memory for tpu_custom_call.1']
    #allocation5 [shape = 'u8[2048]{0}', space=vmem, size = 0x800, scoped, tag = 'output window, operand 0, single buffered']
    %6 = vsyncpa [#allocation3], 0
    %7 = vsyncpa [#allocation4], 0
    // Predicated region
    $region2: #{tpu_custom_call.1} parent=1 // pred_check
      _
    $region3: #{tpu_custom_call.1} parent=1 // pred_check_branch
      %9 = sbr.rel (0) target = $region5
    $region4: #{tpu_custom_call.1} parent=1 // pred_region
      %s11 = ssub.s32 64, 64
      %12 = vsyncadd [#allocation3], %s11
      %s13 = sshll.u32 [#allocation2], 4
      %s14 = int_to_ptr.vmem [resolvable:$true] %s13
      %19 = dma.hbm_to_vmem [thread:$0]  %s0, 64, %s14, [#allocation3], 32, 32, 2
    $region5: #{tpu_custom_call.1} parent=1 // pred_fallthru
      _
    // Predicated region
    $region6: #{tpu_custom_call.1} parent=1 // pred_check
      _
    $region7: #{tpu_custom_call.1} parent=1 // pred_check_branch
      %21 = sbr.rel (0) target = $region9
    $region8: #{tpu_custom_call.1} parent=1 // pred_region
      %22 = dma.done [#allocation3], 64
    $region9: #{tpu_custom_call.1} parent=1 // pred_fallthru
      _
    %v23 = vlaneseq
    %v24 = vshrl.u32 %v23, 7
    %v25 = vlaneseq
    %v26 = vand.u32 %v25, 127
    %v27 = vadd.s32 %v26, 128
    %v28 = vstv 0
    %v29 = vadd.s32 %v28, %v24
    %v30 = vmul.u32 %v29, 256
    %v31 = vadd.s32 %v30, %v26
    %v32 = vadd.s32 %v30, %v27
    %v33 = vshra.s32 %v31, 5
    %v34 = vshra.s32 %v32, 5
    %v35 = vcvt.s32.f32 %v33
    %v36 = vcvt.s32.f32 %v34
    %v37 = vand.u32 %v31, 31
    %v38 = vand.u32 %v32, 31
    %v39 = vcvt.s32.f32 %v37
    %v40 = vcvt.s32.f32 %v38
    %v41 = vmul.f32 %v39, -0.28782314
    %v42 = vmul.f32 %v40, -0.28782314
    %v43 = vmul.f32 %v41, 1.442695
    %v44 = vpow.pop %v43
    %v45 = vmul.f32 %v42, 1.442695
    %v46 = vpow.pop %v45
    %v47 = vmul.f32 %v35, %v44
    %v48 = vmul.f32 %v36, %v46
    %v49 = vand.u32 %v37, 1
    %v50 = vand.u32 %v38, 1
    %v51 = vcvt.s32.f32 %v49
    %v52 = vcvt.s32.f32 %v50
    %v53 = vmul.f32 %v51, 1.5707964
    %v54 = vmul.f32 %v52, 1.5707964
    %v55 = vadd.f32 %v47, %v53
    %v56 = vadd.f32 %v48, %v54
    %v57 = vand.u32 2147483647, %v55
    %vm58 = vcmp.le.f32.partialorder %v57, 0.7853982
    %vm59 = vcmp.lt.s32.totalorder %v55, 0
    %v60 = vand.u32 %v55, 2139095040
    %v61 = vshrl.u32 %v60, 23
    %v62 = vsub.s32 %v61, 127
    %v63 = vand.u32 2147483647, %v55
    %v64 = vand.u32 %v63, 8388607
    %v65 = vor.u32 %v64, 8388608
    %v66 = vsub.s32 0, %v65
    %v67 = vadd.s32 %v62, 1
    %vm68 = vcmp.gt.s32.totalorder %v67, 0
    %v69 = vsel %vm68, %v67, 0
    %v70 = vshrl.u32 %v69, 5
    %v71 = vand.u32 %v69, 31
    %v72 = vsub.s32 32, %v71
    %v73 = vshrl.u32 683565275, %v72
    %v74 = vshll.u32 683565275, %v71
    %v75 = vshrl.u32 2475754826, %v72
    %v76 = vor.u32 %v74, %v75
    %v77 = vshll.u32 2475754826, %v71
    %v78 = vshrl.u32 2131351028, %v72
    %v79 = vor.u32 %v77, %v78
    %v80 = vshll.u32 2131351028, %v71
    %v81 = vshrl.u32 2102212464, %v72
    %v82 = vor.u32 %v80, %v81
    %v83 = vshll.u32 2102212464, %v71
    %v84 = vshrl.u32 920167782, %v72
    %v85 = vor.u32 %v83, %v84
    %v86 = vshll.u32 920167782, %v71
    %v87 = vshrl.u32 1326507024, %v72
    %v88 = vor.u32 %v86, %v87
    %vm89 = vcmp.lt.s32.totalorder %v70, 1
    %vm90 = vcmp.lt.s32.totalorder %v70, 2
    %vm91 = vcmp.lt.s32.totalorder %v70, 3
    %vm92 = vcmp.lt.s32.totalorder %v70, 4
    %v93 = vsel %vm89, %v73, %v76
    %v94 = vsel %vm92, %v82, 2102212464
    %v95 = vsel %vm91, %v79, %v94
    %v96 = vsel %vm90, %v93, %v95
    %v97 = vsel %vm89, %v76, %v79
    %v98 = vsel %vm92, %v85, 920167782
    %v99 = vsel %vm91, %v82, %v98
    %v100 = vsel %vm90, %v97, %v99
    %v101 = vsel %vm89, %v79, %v82
    %v102 = vsel %vm92, %v88, 1326507024
    %v103 = vsel %vm91, %v85, %v102
    %v104 = vsel %vm90, %v101, %v103
    %v105 = vshll.u32 %v65, 8
    %v106 = vmul.u32.u64.compose %v105, %v104
    %v107 = vextract.low.u32 %v106
    %v108 = vextract.high.u32 %v106
    %v109 = vmul.u32.u64.compose %v105, %v100
    %v110 = vextract.low.u32 %v109
    %v111 = vextract.high.u32 %v109
    %v112 = vmul.u32 %v105, %v96
    %v113 = vadd.s32 %v108, %v110
    %vm114 = vc.u32 %v108, %v110
    %v115 = vadd.s32 %v111, 1
    %v116 = vsel %vm114, %v115, %v111
    %v117 = vadd.s32 %v112, %v116
    %v118 = vadd.s32 %v117, 536870912
    %v119 = vshrl.u32 %v118, 30
    %v120 = vshll.u32 %v119, 30
    %v121 = vsub.s32 %v117, %v120
    %vm122 = vcmp.lt.s32.totalorder %v121, 0
    %v123 = vsub.s32 0, %v121
    %v124 = vsel %vm122, %v123, %v121
    %v125 = vclz %v124
    %v126 = vsub.s32 %v125, 2
    %vm127 = vcmp.gt.s32.totalorder 0, %v126
    %v128 = vsel %vm127, 0, %v126
    %v129 = vsub.s32 32, %v128
    %v130 = vshll.u32 %v121, %v128
    %v131 = vshrl.u32 %v113, %v129
    %v132 = vor.u32 %v130, %v131
    %v133 = vsub.s32 4294967266, %v128
    %v134 = vadd.s32 %v133, 127
    %v135 = vshll.u32 %v134, 23
    %v136 = vor.u32 4788187, %v135
    %v137 = vand.u32 2147483647, %v136
    %v139 = vcvt.s32.f32 %v132
    %v140 = vmul.f32 %v139, %v137
    %v141 = vxor.u32 %v140, 2147483648
    %v142 = vsel %vm59, %v141, %v140
    %v143 = vsub.s32 4, %v119
    %v144 = vsel %vm59, %v143, %v119
    %v145 = vsel %vm58, %v55, %v142
    %v146 = vsel %vm58, 0, %v144
    %v147 = vcosq.f32.pop %v145
    %v148 = vsinq.f32.pop %v145
    %vm149 = vweird.f32 %v55
    %v150 = vadd.s32 %v146, 3
    %v151 = vand.u32 %v150, 3
    %vm152 = vcmp.lt.s32.totalorder %v151, 2
    %vm153 = vcmp.eq.s32.totalorder %v151, 0
    %v154 = vxor.u32 %v148, 2147483648
    %v155 = vsel %vm153, %v147, %v154
    %vm156 = vcmp.eq.s32.totalorder %v151, 2
    %v157 = vxor.u32 %v147, 2147483648
    %v158 = vsel %vm156, %v157, %v148
    %v159 = vsel %vm152, %v155, %v158
    %v160 = vsel %vm149, nan, %v159
    %v161 = vand.u32 2147483647, %v56
    %vm162 = vcmp.le.f32.partialorder %v161, 0.7853982
    %vm163 = vcmp.lt.s32.totalorder %v56, 0
    %v164 = vand.u32 %v56, 2139095040
    %v165 = vshrl.u32 %v164, 23
    %v166 = vsub.s32 %v165, 127
    %v167 = vand.u32 2147483647, %v56
    %v168 = vand.u32 %v167, 8388607
    %v169 = vor.u32 %v168, 8388608
    %v170 = vsub.s32 0, %v169
    %v171 = vadd.s32 %v166, 1
    %vm172 = vcmp.gt.s32.totalorder %v171, 0
    %v173 = vsel %vm172, %v171, 0
    %v174 = vshrl.u32 %v173, 5
    %v175 = vand.u32 %v173, 31
    %v176 = vsub.s32 32, %v175
    %v177 = vshrl.u32 683565275, %v176
    %v178 = vshll.u32 683565275, %v175
    %v179 = vshrl.u32 2475754826, %v176
    %v180 = vor.u32 %v178, %v179
    %v181 = vshll.u32 2475754826, %v175
    %v182 = vshrl.u32 2131351028, %v176
    %v183 = vor.u32 %v181, %v182
    %v184 = vshll.u32 2131351028, %v175
    %v185 = vshrl.u32 2102212464, %v176
    %v186 = vor.u32 %v184, %v185
    %v187 = vshll.u32 2102212464, %v175
    %v188 = vshrl.u32 920167782, %v176
    %v189 = vor.u32 %v187, %v188
    %v190 = vshll.u32 920167782, %v175
    %v191 = vshrl.u32 1326507024, %v176
    %v192 = vor.u32 %v190, %v191
    %vm193 = vcmp.lt.s32.totalorder %v174, 1
    %vm194 = vcmp.lt.s32.totalorder %v174, 2
    %vm195 = vcmp.lt.s32.totalorder %v174, 3
    %vm196 = vcmp.lt.s32.totalorder %v174, 4
    %v197 = vsel %vm193, %v177, %v180
    %v198 = vsel %vm196, %v186, 2102212464
    %v199 = vsel %vm195, %v183, %v198
    %v200 = vsel %vm194, %v197, %v199
    %v201 = vsel %vm193, %v180, %v183
    %v202 = vsel %vm196, %v189, 920167782
    %v203 = vsel %vm195, %v186, %v202
    %v204 = vsel %vm194, %v201, %v203
    %v205 = vsel %vm193, %v183, %v186
    %v206 = vsel %vm196, %v192, 1326507024
    %v207 = vsel %vm195, %v189, %v206
    %v208 = vsel %vm194, %v205, %v207
    %v209 = vshll.u32 %v169, 8
    %v210 = vmul.u32.u64.compose %v209, %v208
    %v211 = vextract.low.u32 %v210
    %v212 = vextract.high.u32 %v210
    %v213 = vmul.u32.u64.compose %v209, %v204
    %v214 = vextract.low.u32 %v213
    %v215 = vextract.high.u32 %v213
    %v216 = vmul.u32 %v209, %v200
    %v217 = vadd.s32 %v212, %v214
    %vm218 = vc.u32 %v212, %v214
    %v219 = vadd.s32 %v215, 1
    %v220 = vsel %vm218, %v219, %v215
    %v221 = vadd.s32 %v216, %v220
    %v222 = vadd.s32 %v221, 536870912
    %v223 = vshrl.u32 %v222, 30
    %v224 = vshll.u32 %v223, 30
    %v225 = vsub.s32 %v221, %v224
    %vm226 = vcmp.lt.s32.totalorder %v225, 0
    %v227 = vsub.s32 0, %v225
    %v228 = vsel %vm226, %v227, %v225
    %v229 = vclz %v228
    %v230 = vsub.s32 %v229, 2
    %vm231 = vcmp.gt.s32.totalorder 0, %v230
    %v232 = vsel %vm231, 0, %v230
    %v233 = vsub.s32 32, %v232
    %v234 = vshll.u32 %v225, %v232
    %v235 = vshrl.u32 %v217, %v233
    %v236 = vor.u32 %v234, %v235
    %v237 = vsub.s32 4294967266, %v232
    %v238 = vadd.s32 %v237, 127
    %v239 = vshll.u32 %v238, 23
    %v240 = vor.u32 4788187, %v239
    %v241 = vand.u32 2147483647, %v240
    %v243 = vcvt.s32.f32 %v236
    %v244 = vmul.f32 %v243, %v241
    %v245 = vxor.u32 %v244, 2147483648
    %v246 = vsel %vm163, %v245, %v244
    %v247 = vsub.s32 4, %v223
    %v248 = vsel %vm163, %v247, %v223
    %v249 = vsel %vm162, %v56, %v246
    %v250 = vsel %vm162, 0, %v248
    %v251 = vcosq.f32.pop %v249
    %v252 = vsinq.f32.pop %v249
    %vm253 = vweird.f32 %v56
    %v254 = vadd.s32 %v250, 3
    %v255 = vand.u32 %v254, 3
    %vm256 = vcmp.lt.s32.totalorder %v255, 2
    %vm257 = vcmp.eq.s32.totalorder %v255, 0
    %v258 = vxor.u32 %v252, 2147483648
    %v259 = vsel %vm257, %v251, %v258
    %vm260 = vcmp.eq.s32.totalorder %v255, 2
    %v261 = vxor.u32 %v251, 2147483648
    %v262 = vsel %vm260, %v261, %v252
    %v263 = vsel %vm256, %v259, %v262
    %v264 = vsel %vm253, nan, %v263
    %v265 = vld [vmem:[#allocation2] sm:$0x3]
    %v266 = vld [vmem:[#allocation2 + $0x2] sm:$0x3]
    %v269 = vcombine.low %v160, %v264
    %v271 = vunpack.c.l.s4 1966171168
    %v272 = vunpack.c.0.s8 %v271
    %v273 = vlaneseq
    %v274 = vshrl.u32 %v273, 7
    %v275 = vsub.s32 %v272, %v274
    %v276 = vrot.slane %v269, %v275
    %v278 = vunpack.c.l.s4 1966171168
    %v279 = vunpack.c.0.s8 %v278
    %v280 = vlaneseq
    %v281 = vshrl.u32 %v280, 7
    %v282 = vsub.s32 %v279, %v281
    %v283 = vrot.slane %v276, %v282
    %v285 = vadd.f32 %v265, %v283
    %v286 = vadd.f32 %v266, %v283
    %v287 = vlaneseq
    %vm288 = vcmp.ge.s32.totalorder %v287, 0
    %vm289 = vcmp.lt.s32.totalorder %v287, 256
    %vm290 = vmand %vm288, %vm289
    %291 = vst.msk [vmem:[#allocation5] sm:$0x3] %vm290, %v285
    %292 = vst.msk [vmem:[#allocation5 + $0x2] sm:$0x3] %vm290, %v286
    // Predicated region
    $region10: #{tpu_custom_call.1} parent=1 // pred_check
      _
    $region11: #{tpu_custom_call.1} parent=1 // pred_check_branch
      %294 = sbr.rel (0) target = $region13
    $region12: #{tpu_custom_call.1} parent=1 // pred_region
      %s296 = ssub.s32 64, 64
      %297 = vsyncadd [#allocation4], %s296
      %s298 = sshll.u32 [#allocation5], 4
      %s299 = int_to_ptr.vmem [resolvable:$true] %s298
      %304 = dma.vmem_to_hbm [thread:$0]  %s299, 64, %s1, [#allocation4], 32, 32, 2
    $region13: #{tpu_custom_call.1} parent=1 // pred_fallthru
      _
    // Predicated region
    $region14: #{tpu_custom_call.1} parent=1 // pred_check
      _
    $region15: #{tpu_custom_call.1} parent=1 // pred_check_branch
      %306 = sbr.rel (0) target = $region17
    $region16: #{tpu_custom_call.1} parent=1 // pred_region
      %307 = dma.done [#allocation4], 64
    $region17: #{tpu_custom_call.1} parent=1 // pred_fallthru
      _
    %308 = vsyncpa [#allocation3], 1
    %309 = vsyncpa [#allocation4], 1

</llo_original>
